<compile_context>
chip_gen: v6e
topology: v6e:2x2x1
jax: 0.10.0
libtpu: 0.0.40
codegen_flags: <defaults>
</compile_context>

<pallas_src>
import functools

import jax
import jax.numpy as jnp
from jax.experimental import pallas as pl
from jax.experimental.pallas import tpu as pltpu

# SELU constants (match torch.nn.functional.selu)
_SELU_ALPHA = 1.6732632423543772
_SELU_SCALE = 1.0507009873554805

_MIN_LANE_TILE = 8192   # per-step floor: amortizes ~0.35us per-grid-step overhead
_TARGET_STEPS = 4       # aim for >=4 grid steps on big batches (megacore sharding)


def _selu(x):
    return _SELU_SCALE * jnp.where(x > 0, x, _SELU_ALPHA * (jnp.exp(x) - 1.0))


def _round_up(v, m):
    return ((v + m - 1) // m) * m


def _pick_tile(batch, block_b):
    """Pick the batch tile (lane) width and number of grid steps."""
    bt = _round_up(max(1, min(block_b, batch)), 128)           # lane-dense tiles
    # Cap the tile so large batches split into >=_TARGET_STEPS steps (keeps both v7x
    # TensorCores fed), but never below the overhead-amortizing floor.
    bt_split = max(_MIN_LANE_TILE, _round_up(-(-batch // _TARGET_STEPS), 128))
    bt = min(bt, bt_split)
    n_tiles = -(-batch // bt)
    return bt, n_tiles


def _mlp_kernel(x_ref, w1_ref, b1_ref, w2_ref, b2_ref, w3_ref, b3_ref,
                w4_ref, b4_ref, o_ref, *, n_output, compute_dtype):
    """One batch tile of the 4-layer MLP; activations are [rows, batch] (batch on lanes)."""
    h = x_ref[...]                                        # (n_feature, bt)
    for w_ref, b_ref in ((w1_ref, b1_ref), (w2_ref, b2_ref), (w3_ref, b3_ref)):
        z = jnp.dot(w_ref[...], h, preferred_element_type=jnp.float32) + b_ref[...]
        h = _selu(z.astype(compute_dtype))                # padded rows stay exactly 0
    z = jnp.dot(w4_ref[...], h, preferred_element_type=jnp.float32) + b4_ref[...]
    o_ref[...] = z[:n_output, :].astype(o_ref.dtype)


def _prep_params(params, w_dtype):
    """Per-layer transposed weights padded to 8-aligned output rows + f32 bias columns.

    Layer l weight is stored as [out_pad, in_pad] (in_pad = previous layer's out_pad, or
    n_feature for layer 0) with zeros outside the true [out, in] block; bias as [out_pad, 1].
    Padding is exact because SELU(0) == 0."""
    arrs = []
    in_pad = params[0][0].shape[0]                        # first layer consumes raw features
    for (w, b) in params:
        fan_in, fan_out = w.shape
        out_pad = _round_up(fan_out, 8)
        wt = jnp.zeros((out_pad, in_pad), w_dtype).at[:fan_out, :fan_in].set(
            w.T.astype(w_dtype))
        bc = jnp.zeros((out_pad, 1), jnp.float32).at[:fan_out, 0].set(
            b.reshape(fan_out).astype(jnp.float32))
        arrs += [wt, bc]
        in_pad = out_pad
    return tuple(arrs)


@functools.partial(jax.jit, static_argnames=("bt", "n_tiles", "n_output", "use_bf16"))
def _net_forward_impl(x, params, *, bt, n_tiles, n_output, use_bf16):
    B, nf = x.shape
    b_pad = bt * n_tiles
    in_dt = jnp.bfloat16 if use_bf16 else jnp.float32

    packed = _prep_params(params, in_dt)

    # Lane-dense layout: batch on the 128-lane axis.  Transpose + (remainder-only) pad are
    # under the same jit as the kernel so XLA fuses them into a single pass.
    xt = x.T.astype(in_dt)
    if b_pad != B:
        xt = jnp.pad(xt, ((0, 0), (0, b_pad - B)))

    kernel = functools.partial(_mlp_kernel, n_output=n_output, compute_dtype=in_dt)

    w_shapes = [packed[2 * l].shape for l in range(4)]
    flops = 2 * b_pad * sum(o * i for o, i in w_shapes)
    transcendentals = b_pad * sum(o for o, _ in w_shapes[:3])     # one exp per SELU row
    itemsize = 2 if use_bf16 else 4
    bytes_accessed = (nf * b_pad * itemsize + n_output * b_pad * 4
                      + sum(int(p.size) * p.dtype.itemsize for p in packed))
    cost = pl.CostEstimate(flops=flops, transcendentals=transcendentals,
                           bytes_accessed=bytes_accessed)

    out_t = pl.pallas_call(
        kernel,
        out_shape=jax.ShapeDtypeStruct((n_output, b_pad), jnp.float32),
        grid=(n_tiles,),
        in_specs=[
            # x: one (n_feature, bt) lane-dense tile per grid step (auto double-buffered).
            pl.BlockSpec((nf, bt), lambda i: (0, i)),
        ] + [
            # params: constant block index -> fetched once, VMEM-resident for the whole grid.
            pl.BlockSpec(p.shape, lambda i: (0, 0)) for p in packed
        ],
        out_specs=pl.BlockSpec((n_output, bt), lambda i: (0, i)),
        compiler_params=pltpu.CompilerParams(
            dimension_semantics=("parallel",),        # shards batch tiles across TCs on v7x
            vmem_limit_bytes=32 * 1024 * 1024,        # safe for bt<=32768 on v5e/v6e/v7x
        ),
        cost_estimate=cost,
    )(xt, *packed)

    return out_t[:, :B].T


def net_forward(x, params, *, block_b=32768, use_bf16=False):
    """Pallas forward pass. x: [B, n_feature] -> [B, n_output] (nn.Linear convention).

    block_b: max batch-tile width in lanes (default 32K; raise vmem_limit_bytes if you push
    it much further).  use_bf16: opt-in bf16 compute (f32 MXU accumulation), faster on
    v6e/v7x with a small deviation from f32 reference numerics."""
    B, n_feature = x.shape
    n_output = params[-1][0].shape[1]
    bt, n_tiles = _pick_tile(B, block_b)
    return _net_forward_impl(x, tuple(tuple(p) for p in params),
                             bt=bt, n_tiles=n_tiles, n_output=n_output,
                             use_bf16=use_bf16)


def init_params(key, n_feature, n_output):
    """Deterministic init mimicking PyTorch Linear default U(-1/sqrt(fan_in), 1/sqrt(fan_in)).
    Weights are stored as [in_dim, out_dim]; biases as [1, out_dim]."""
    dims = [(n_feature, 5), (5, 10), (10, 5), (5, n_output)]
    params = []
    for (fan_in, fan_out) in dims:
        key, kw, kb = jax.random.split(key, 3)
        bound = 1.0 / jnp.sqrt(jnp.float32(fan_in))
        w = jax.random.uniform(kw, (fan_in, fan_out), jnp.float32, -bound, bound)
        b = jax.random.uniform(kb, (1, fan_out), jnp.float32, -bound, bound)
        params.append((w, b))
    return params


def net_forward_ref(x, params):
    h = x
    for i, (w, b) in enumerate(params):
        h = h @ w + b
        if i < len(params) - 1:
            h = _selu(h)
    return h


if __name__ == "__main__":
    key = jax.random.PRNGKey(0)
    B, n_feature, n_output = 8, 4, 1

    key, kx = jax.random.split(key)
    x = jax.random.normal(kx, (B, n_feature), jnp.float32)
    params = init_params(key, n_feature, n_output)

    # Small single-tile path.
    out = net_forward(x, params)
    jax.block_until_ready(out)
    ref = net_forward_ref(x, params)
    assert out.shape == (B, n_output)
    assert jnp.allclose(out, ref, atol=1e-5, rtol=1e-5)

    # Multi-tile grid with a ragged, padded last tile (3 steps of 128 lanes).
    key, kx2 = jax.random.split(key)
    x2 = jax.random.normal(kx2, (300, n_feature), jnp.float32)
    out2 = net_forward(x2, params, block_b=128)
    jax.block_until_ready(out2)
    ref2 = net_forward_ref(x2, params)
    assert out2.shape == (300, n_output)
    assert jnp.allclose(out2, ref2, atol=1e-5, rtol=1e-5)

    # Production-style path: ~8K-lane tiles, 4-way parallel grid, ragged last tile.
    key, kx3 = jax.random.split(key)
    x3 = jax.random.normal(kx3, (33000, n_feature), jnp.float32)
    out3 = net_forward(x3, params)
    jax.block_until_ready(out3)
    ref3 = net_forward_ref(x3, params)
    assert out3.shape == (33000, n_output)
    assert jnp.allclose(out3, ref3, atol=1e-4, rtol=1e-4)

    # Opt-in bf16 compute path (fast path on v6e/v7x); loose tolerance vs f32 reference.
    out4 = net_forward(x2, params, block_b=128, use_bf16=True)
    jax.block_until_ready(out4)
    assert jnp.allclose(out4, ref2, atol=1e-1, rtol=1e-1)

    print("KERNEL_OK")
</pallas_src>

<mosaic_0001>
module attributes {stable_mosaic.version = 11 : i64} {
  func.func @_mlp_kernel(%arg0: i32, %arg1: memref<4x128xf32, #tpu.memory_space<vmem>>, %arg2: memref<8x4xf32, #tpu.memory_space<vmem>>, %arg3: memref<8x1xf32, #tpu.memory_space<vmem>>, %arg4: memref<16x8xf32, #tpu.memory_space<vmem>>, %arg5: memref<16x1xf32, #tpu.memory_space<vmem>>, %arg6: memref<8x16xf32, #tpu.memory_space<vmem>>, %arg7: memref<8x1xf32, #tpu.memory_space<vmem>>, %arg8: memref<8x8xf32, #tpu.memory_space<vmem>>, %arg9: memref<8x1xf32, #tpu.memory_space<vmem>>, %arg10: memref<1x128xf32, #tpu.memory_space<vmem>>) attributes {dimension_semantics = [#tpu.dimension_semantics<parallel>], iteration_bounds = array<i64: 1>, scalar_prefetch = 0 : i64, scratch_operands = 0 : i64, tpu.core_type = #tpu.core_type<tc>, window_params = [{transform_indices = @transform_0, window_bounds = array<i64: 4, 128>}, {pipeline_mode = #tpu.pipeline_mode<synchronous>, transform_indices = @transform_1, window_bounds = array<i64: 8, 4>}, {pipeline_mode = #tpu.pipeline_mode<synchronous>, transform_indices = @transform_2, window_bounds = array<i64: 8, 1>}, {pipeline_mode = #tpu.pipeline_mode<synchronous>, transform_indices = @transform_3, window_bounds = array<i64: 16, 8>}, {pipeline_mode = #tpu.pipeline_mode<synchronous>, transform_indices = @transform_4, window_bounds = array<i64: 16, 1>}, {pipeline_mode = #tpu.pipeline_mode<synchronous>, transform_indices = @transform_5, window_bounds = array<i64: 8, 16>}, {pipeline_mode = #tpu.pipeline_mode<synchronous>, transform_indices = @transform_6, window_bounds = array<i64: 8, 1>}, {pipeline_mode = #tpu.pipeline_mode<synchronous>, transform_indices = @transform_7, window_bounds = array<i64: 8, 8>}, {pipeline_mode = #tpu.pipeline_mode<synchronous>, transform_indices = @transform_8, window_bounds = array<i64: 8, 1>}, {transform_indices = @transform_9, window_bounds = array<i64: 1, 128>}]} {
    %c0 = arith.constant 0 : index
    %c0_0 = arith.constant 0 : index
    %0 = vector.load %arg1[%c0, %c0_0] : memref<4x128xf32, #tpu.memory_space<vmem>>, vector<4x128xf32>
    %c0_1 = arith.constant 0 : index
    %c0_2 = arith.constant 0 : index
    %1 = vector.load %arg2[%c0_1, %c0_2] : memref<8x4xf32, #tpu.memory_space<vmem>>, vector<8x4xf32>
    %cst = arith.constant dense<0.000000e+00> : vector<8x128xf32>
    %2 = tpu.matmul %1, %0, %cst {dimension_numbers = #tpu.dot_dimension_numbers<[1], [0], [0], [1], [0, 0, 1, 1], [], []>} : vector<8x4xf32>, vector<4x128xf32>, vector<8x128xf32> -> vector<8x128xf32>
    %c0_3 = arith.constant 0 : index
    %c0_4 = arith.constant 0 : index
    %3 = vector.load %arg3[%c0_3, %c0_4] : memref<8x1xf32, #tpu.memory_space<vmem>>, vector<8x1xf32>
    %4 = vector.broadcast %3 : vector<8x1xf32> to vector<8x128xf32>
    %5 = arith.addf %2, %4 : vector<8x128xf32>
    %cst_5 = arith.constant 0.000000e+00 : f32
    %6 = vector.broadcast %cst_5 : f32 to vector<8x128xf32>
    %7 = arith.cmpf ogt, %5, %6 : vector<8x128xf32>
    %8 = math.exp %5 : vector<8x128xf32>
    %cst_6 = arith.constant 1.000000e+00 : f32
    %9 = vector.broadcast %cst_6 : f32 to vector<8x128xf32>
    %10 = arith.subf %8, %9 : vector<8x128xf32>
    %cst_7 = arith.constant 1.67326319 : f32
    %11 = vector.broadcast %cst_7 : f32 to vector<8x128xf32>
    %12 = arith.mulf %11, %10 : vector<8x128xf32>
    %13 = arith.select %7, %5, %12 : vector<8x128xi1>, vector<8x128xf32>
    %cst_8 = arith.constant 1.05070102 : f32
    %14 = vector.broadcast %cst_8 : f32 to vector<8x128xf32>
    %15 = arith.mulf %14, %13 : vector<8x128xf32>
    %c0_9 = arith.constant 0 : index
    %c0_10 = arith.constant 0 : index
    %16 = vector.load %arg4[%c0_9, %c0_10] : memref<16x8xf32, #tpu.memory_space<vmem>>, vector<16x8xf32>
    %cst_11 = arith.constant dense<0.000000e+00> : vector<16x128xf32>
    %17 = tpu.matmul %16, %15, %cst_11 {dimension_numbers = #tpu.dot_dimension_numbers<[1], [0], [0], [1], [0, 0, 1, 1], [], []>} : vector<16x8xf32>, vector<8x128xf32>, vector<16x128xf32> -> vector<16x128xf32>
    %c0_12 = arith.constant 0 : index
    %c0_13 = arith.constant 0 : index
    %18 = vector.load %arg5[%c0_12, %c0_13] : memref<16x1xf32, #tpu.memory_space<vmem>>, vector<16x1xf32>
    %19 = vector.broadcast %18 : vector<16x1xf32> to vector<16x128xf32>
    %20 = arith.addf %17, %19 : vector<16x128xf32>
    %cst_14 = arith.constant 0.000000e+00 : f32
    %21 = vector.broadcast %cst_14 : f32 to vector<16x128xf32>
    %22 = arith.cmpf ogt, %20, %21 : vector<16x128xf32>
    %23 = math.exp %20 : vector<16x128xf32>
    %cst_15 = arith.constant 1.000000e+00 : f32
    %24 = vector.broadcast %cst_15 : f32 to vector<16x128xf32>
    %25 = arith.subf %23, %24 : vector<16x128xf32>
    %cst_16 = arith.constant 1.67326319 : f32
    %26 = vector.broadcast %cst_16 : f32 to vector<16x128xf32>
    %27 = arith.mulf %26, %25 : vector<16x128xf32>
    %28 = arith.select %22, %20, %27 : vector<16x128xi1>, vector<16x128xf32>
    %cst_17 = arith.constant 1.05070102 : f32
    %29 = vector.broadcast %cst_17 : f32 to vector<16x128xf32>
    %30 = arith.mulf %29, %28 : vector<16x128xf32>
    %c0_18 = arith.constant 0 : index
    %c0_19 = arith.constant 0 : index
    %31 = vector.load %arg6[%c0_18, %c0_19] : memref<8x16xf32, #tpu.memory_space<vmem>>, vector<8x16xf32>
    %cst_20 = arith.constant dense<0.000000e+00> : vector<8x128xf32>
    %32 = tpu.matmul %31, %30, %cst_20 {dimension_numbers = #tpu.dot_dimension_numbers<[1], [0], [0], [1], [0, 0, 1, 1], [], []>} : vector<8x16xf32>, vector<16x128xf32>, vector<8x128xf32> -> vector<8x128xf32>
    %c0_21 = arith.constant 0 : index
    %c0_22 = arith.constant 0 : index
    %33 = vector.load %arg7[%c0_21, %c0_22] : memref<8x1xf32, #tpu.memory_space<vmem>>, vector<8x1xf32>
    %34 = vector.broadcast %33 : vector<8x1xf32> to vector<8x128xf32>
    %35 = arith.addf %32, %34 : vector<8x128xf32>
    %cst_23 = arith.constant 0.000000e+00 : f32
    %36 = vector.broadcast %cst_23 : f32 to vector<8x128xf32>
    %37 = arith.cmpf ogt, %35, %36 : vector<8x128xf32>
    %38 = math.exp %35 : vector<8x128xf32>
    %cst_24 = arith.constant 1.000000e+00 : f32
    %39 = vector.broadcast %cst_24 : f32 to vector<8x128xf32>
    %40 = arith.subf %38, %39 : vector<8x128xf32>
    %cst_25 = arith.constant 1.67326319 : f32
    %41 = vector.broadcast %cst_25 : f32 to vector<8x128xf32>
    %42 = arith.mulf %41, %40 : vector<8x128xf32>
    %43 = arith.select %37, %35, %42 : vector<8x128xi1>, vector<8x128xf32>
    %cst_26 = arith.constant 1.05070102 : f32
    %44 = vector.broadcast %cst_26 : f32 to vector<8x128xf32>
    %45 = arith.mulf %44, %43 : vector<8x128xf32>
    %c0_27 = arith.constant 0 : index
    %c0_28 = arith.constant 0 : index
    %46 = vector.load %arg8[%c0_27, %c0_28] : memref<8x8xf32, #tpu.memory_space<vmem>>, vector<8x8xf32>
    %cst_29 = arith.constant dense<0.000000e+00> : vector<8x128xf32>
    %47 = tpu.matmul %46, %45, %cst_29 {dimension_numbers = #tpu.dot_dimension_numbers<[1], [0], [0], [1], [0, 0, 1, 1], [], []>} : vector<8x8xf32>, vector<8x128xf32>, vector<8x128xf32> -> vector<8x128xf32>
    %c0_30 = arith.constant 0 : index
    %c0_31 = arith.constant 0 : index
    %48 = vector.load %arg9[%c0_30, %c0_31] : memref<8x1xf32, #tpu.memory_space<vmem>>, vector<8x1xf32>
    %49 = vector.broadcast %48 : vector<8x1xf32> to vector<8x128xf32>
    %50 = arith.addf %47, %49 : vector<8x128xf32>
    %51 = vector.extract_strided_slice %50 {offsets = [0, 0], sizes = [1, 128], strides = [1, 1]} : vector<8x128xf32> to vector<1x128xf32>
    %c0_32 = arith.constant 0 : index
    %c0_33 = arith.constant 0 : index
    %52 = vector.load %arg10[%c0_32, %c0_33] : memref<1x128xf32, #tpu.memory_space<vmem>>, vector<1x128xf32>
    tpu.vector_store %arg10[%c0_32, %c0_33], %51 {strides = array<i32>} : memref<1x128xf32, #tpu.memory_space<vmem>>, vector<1x128xf32>,
    return
  }
  func.func @transform_0(%arg0: i32) -> (i32, i32) {
    %c0_i32 = arith.constant 0 : i32
    %c0_i32_0 = arith.constant 0 : i32
    return %c0_i32, %arg0 : i32, i32
  }
  func.func @transform_1(%arg0: i32) -> (i32, i32) {
    %c0_i32 = arith.constant 0 : i32
    %c0_i32_0 = arith.constant 0 : i32
    %c0_i32_1 = arith.constant 0 : i32
    return %c0_i32, %c0_i32_0 : i32, i32
  }
  func.func @transform_2(%arg0: i32) -> (i32, i32) {
    %c0_i32 = arith.constant 0 : i32
    %c0_i32_0 = arith.constant 0 : i32
    %c0_i32_1 = arith.constant 0 : i32
    return %c0_i32, %c0_i32_0 : i32, i32
  }
  func.func @transform_3(%arg0: i32) -> (i32, i32) {
    %c0_i32 = arith.constant 0 : i32
    %c0_i32_0 = arith.constant 0 : i32
    %c0_i32_1 = arith.constant 0 : i32
    return %c0_i32, %c0_i32_0 : i32, i32
  }
  func.func @transform_4(%arg0: i32) -> (i32, i32) {
    %c0_i32 = arith.constant 0 : i32
    %c0_i32_0 = arith.constant 0 : i32
    %c0_i32_1 = arith.constant 0 : i32
    return %c0_i32, %c0_i32_0 : i32, i32
  }
  func.func @transform_5(%arg0: i32) -> (i32, i32) {
    %c0_i32 = arith.constant 0 : i32
    %c0_i32_0 = arith.constant 0 : i32
    %c0_i32_1 = arith.constant 0 : i32
    return %c0_i32, %c0_i32_0 : i32, i32
  }
  func.func @transform_6(%arg0: i32) -> (i32, i32) {
    %c0_i32 = arith.constant 0 : i32
    %c0_i32_0 = arith.constant 0 : i32
    %c0_i32_1 = arith.constant 0 : i32
    return %c0_i32, %c0_i32_0 : i32, i32
  }
  func.func @transform_7(%arg0: i32) -> (i32, i32) {
    %c0_i32 = arith.constant 0 : i32
    %c0_i32_0 = arith.constant 0 : i32
    %c0_i32_1 = arith.constant 0 : i32
    return %c0_i32, %c0_i32_0 : i32, i32
  }
  func.func @transform_8(%arg0: i32) -> (i32, i32) {
    %c0_i32 = arith.constant 0 : i32
    %c0_i32_0 = arith.constant 0 : i32
    %c0_i32_1 = arith.constant 0 : i32
    return %c0_i32, %c0_i32_0 : i32, i32
  }
  func.func @transform_9(%arg0: i32) -> (i32, i32) {
    %c0_i32 = arith.constant 0 : i32
    %c0_i32_0 = arith.constant 0 : i32
    return %c0_i32, %arg0 : i32, i32
  }
}

</mosaic_0001>

<llo_original>
// kernel: _net_forward_impl.1
$region0: #{_net_forward_impl.1}
  #allocation0 [shape = 'u32[]', space=smem, size = 0x4, offset = 0x4, fixed_abs, tag = 'smem constant byte address 0x4 - core index']
  #allocation1 [shape = 'u32[144,128]{1,0:T(1,128)}', space=vmem, size = 0x12000, scoped, tag = 'internal scratch']
  %s0 = inlined_call_operand.vmem [shape: f32[4,128], index: 0, kind: input, shape index: {}]
  %s1 = inlined_call_operand.vmem [shape: f32[8,4], index: 1, kind: input, shape index: {}]
  %s2 = inlined_call_operand.vmem [shape: f32[8,1], index: 2, kind: input, shape index: {}]
  %s3 = inlined_call_operand.vmem [shape: f32[16,8], index: 3, kind: input, shape index: {}]
  %s4 = inlined_call_operand.vmem [shape: f32[16,1], index: 4, kind: input, shape index: {}]
  %s5 = inlined_call_operand.vmem [shape: f32[8,16], index: 5, kind: input, shape index: {}]
  %s6 = inlined_call_operand.vmem [shape: f32[8,1], index: 6, kind: input, shape index: {}]
  %s7 = inlined_call_operand.vmem [shape: f32[8,8], index: 7, kind: input, shape index: {}]
  %s8 = inlined_call_operand.vmem [shape: f32[8,1], index: 8, kind: input, shape index: {}]
  %s9 = inlined_call_operand.vmem [shape: f32[1,128], index: 9, kind: output, shape index: {}]
  %s10 = sld [smem:[#allocation0]]
  $region46: #{_net_forward_impl.1} parent=0
    _
  %s12 = ssub.s32 1, %s10
  %s13 = scalar_select 0, %s12, %s10
  // Predicated region
  $region2: #{_net_forward_impl.1} parent=0 // pred_check
    _
  $region3: #{_net_forward_impl.1} parent=0 // pred_check_branch
    %15 = sbr.rel (0) target = $region5
  $region4: #{_net_forward_impl.1} parent=0 // pred_region
    _
  $region5: #{_net_forward_impl.1} parent=0 // pred_fallthru
    _
  // Predicated region
  $region6: #{_net_forward_impl.1} parent=0 // pred_check
    _
  $region7: #{_net_forward_impl.1} parent=0 // pred_check_branch
    %17 = sbr.rel (0) target = $region9
  $region8: #{_net_forward_impl.1} parent=0 // pred_region
    _
  $region9: #{_net_forward_impl.1} parent=0 // pred_fallthru
    _
  // Predicated region
  $region10: #{_net_forward_impl.1} parent=0 // pred_check
    _
  $region11: #{_net_forward_impl.1} parent=0 // pred_check_branch
    %19 = sbr.rel (0) target = $region13
  $region12: #{_net_forward_impl.1} parent=0 // pred_region
    _
  $region13: #{_net_forward_impl.1} parent=0 // pred_fallthru
    _
  // Predicated region
  $region14: #{_net_forward_impl.1} parent=0 // pred_check
    _
  $region15: #{_net_forward_impl.1} parent=0 // pred_check_branch
    %21 = sbr.rel (0) target = $region17
  $region16: #{_net_forward_impl.1} parent=0 // pred_region
    _
  $region17: #{_net_forward_impl.1} parent=0 // pred_fallthru
    _
  // Predicated region
  $region18: #{_net_forward_impl.1} parent=0 // pred_check
    _
  $region19: #{_net_forward_impl.1} parent=0 // pred_check_branch
    %23 = sbr.rel (0) target = $region21
  $region20: #{_net_forward_impl.1} parent=0 // pred_region
    _
  $region21: #{_net_forward_impl.1} parent=0 // pred_fallthru
    _
  // Predicated region
  $region22: #{_net_forward_impl.1} parent=0 // pred_check
    _
  $region23: #{_net_forward_impl.1} parent=0 // pred_check_branch
    %25 = sbr.rel (0) target = $region25
  $region24: #{_net_forward_impl.1} parent=0 // pred_region
    _
  $region25: #{_net_forward_impl.1} parent=0 // pred_fallthru
    _
  // Predicated region
  $region26: #{_net_forward_impl.1} parent=0 // pred_check
    _
  $region27: #{_net_forward_impl.1} parent=0 // pred_check_branch
    %27 = sbr.rel (0) target = $region29
  $region28: #{_net_forward_impl.1} parent=0 // pred_region
    _
  $region29: #{_net_forward_impl.1} parent=0 // pred_fallthru
    _
  // Predicated region
  $region30: #{_net_forward_impl.1} parent=0 // pred_check
    _
  $region31: #{_net_forward_impl.1} parent=0 // pred_check_branch
    %29 = sbr.rel (0) target = $region33
  $region32: #{_net_forward_impl.1} parent=0 // pred_region
    _
  $region33: #{_net_forward_impl.1} parent=0 // pred_fallthru
    _
  // Predicated region
  $region34: #{_net_forward_impl.1} parent=0 // pred_check
    _
  $region35: #{_net_forward_impl.1} parent=0 // pred_check_branch
    %31 = sbr.rel (0) target = $region37
  $region36: #{_net_forward_impl.1} parent=0 // pred_region
    _
  $region37: #{_net_forward_impl.1} parent=0 // pred_fallthru
    _
  %v32 = vld [vmem:[%s0] sm:$0xf]
  %v33 = vld [vmem:[%s1] sm:$0xff]
  %v34 = vld [vmem:[%s2] sm:$0xff]
  %36 = vset.pattern.permute.xlu0 0
  %37 = vperm.xlu0 %36, %v34
  %v38 = vpop.permute.xlu0 %37
  %vm40 = vcmask 31744
  %v42 = vsel %vm40, %v33, 0
  %vm44 = vcmask 1043456
  %v46 = vsel %vm44, %v32, 0
  %48 = vmatprep.subr.mxu0 0.0
  %49 = vmatpush1.msra.mxu0 0.0
  %50 = vmatprep.subr.mxu0 0.0
  %51 = vmatpush1.msra.mxu0 0.0
  %52 = vmatprep.subr.mxu0 0.0
  %53 = vmatpush1.msra.mxu0 0.0
  %54 = vmatprep.subr.mxu0 0.0
  %55 = vmatpush1.msra.mxu0 0.0
  %56 = vmatprep.subr.mxu0 0.0
  %57 = vmatpush1.msra.mxu0 0.0
  %58 = vmatprep.subr.mxu0 0.0
  %59 = vmatpush1.msra.mxu0 0.0
  %60 = vmatprep.subr.mxu0 0.0
  %61 = vmatpush1.msra.mxu0 0.0
  %62 = vmatprep.subr.mxu0 0.0
  %63 = vmatpush1.msra.mxu0 0.0
  %64 = vmatprep.subr.mxu0 0.0
  %65 = vmatpush1.msra.mxu0 0.0
  %66 = vmatprep.subr.mxu0 0.0
  %67 = vmatpush1.msra.mxu0 0.0
  %68 = vmatprep.subr.mxu0 0.0
  %69 = vmatpush1.msra.mxu0 0.0
  %70 = vmatprep.subr.mxu0 0.0
  %71 = vmatpush1.msra.mxu0 0.0
  %72 = vmatprep.subr.mxu0 0.0
  %73 = vmatpush1.msra.mxu0 0.0
  %74 = vmatprep.subr.mxu0 0.0
  %75 = vmatpush1.msra.mxu0 0.0
  %76 = vmatprep.subr.mxu0 0.0
  %77 = vmatpush1.msra.mxu0 0.0
  %78 = vmatprep.subr.mxu0 0.0
  %79 = vmatpush1.msra.mxu0 %v46
  %80 = vmatprep.subr.mxu0 0.0
  %81 = vmatpush2.msra.mxu0 0.0
  %82 = vmatprep.subr.mxu0 0.0
  %83 = vmatpush2.msra.mxu0 0.0
  %84 = vmatprep.subr.mxu0 0.0
  %85 = vmatpush2.msra.mxu0 0.0
  %86 = vmatprep.subr.mxu0 0.0
  %87 = vmatpush2.msra.mxu0 0.0
  %88 = vmatprep.subr.mxu0 0.0
  %89 = vmatpush2.msra.mxu0 0.0
  %90 = vmatprep.subr.mxu0 0.0
  %91 = vmatpush2.msra.mxu0 0.0
  %92 = vmatprep.subr.mxu0 0.0
  %93 = vmatpush2.msra.mxu0 0.0
  %94 = vmatprep.subr.mxu0 0.0
  %95 = vmatpush2.msra.mxu0 0.0
  %96 = vmatprep.subr.mxu0 0.0
  %97 = vmatpush2.msra.mxu0 0.0
  %98 = vmatprep.subr.mxu0 0.0
  %99 = vmatpush2.msra.mxu0 0.0
  %100 = vmatprep.subr.mxu0 0.0
  %101 = vmatpush2.msra.mxu0 0.0
  %102 = vmatprep.subr.mxu0 0.0
  %103 = vmatpush2.msra.mxu0 0.0
  %104 = vmatprep.subr.mxu0 0.0
  %105 = vmatpush2.msra.mxu0 0.0
  %106 = vmatprep.subr.mxu0 0.0
  %107 = vmatpush2.msra.mxu0 0.0
  %108 = vmatprep.subr.mxu0 0.0
  %109 = vmatpush2.msra.mxu0 0.0
  %110 = vmatprep.subr.mxu0 0.0
  %111 = vmatpush2.msra.mxu0 0.0
  %112 = vmatprep.mubr.f32.mxu0 0.0
  %113 = vmatmul.mubr.f32.gmra.mxu0 %v42
  %v114 = vpop.f32.mrf.mxu0
  %v115 = vadd.f32 %v38, %v114
  %v116 = vpop.f32.mrf.mxu0
  %117 = vdwg.mxu0
  %vm118 = vcmp.gt.f32.partialorder %v115, 0.0
  %v119 = vmul.f32 %v115, 1.442695
  %v120 = vpow.pop %v119
  %v121 = vsub.f32 %v120, 1.0
  %v122 = vmul.f32 %v121, 1.6732632
  %v123 = vsel %vm118, %v115, %v122
  %v124 = vmul.f32 %v123, 1.050701
  %v125 = vld [vmem:[%s3] sm:$0xff]
  %v126 = vld [vmem:[%s3 + $0x8] sm:$0xff]
  %v127 = vld [vmem:[%s4] sm:$0xff]
  %v128 = vld [vmem:[%s4 + $0x8] sm:$0xff]
  %130 = vset.pattern.permute.xlu0 0
  %131 = vperm.xlu0 %130, %v127
  %v132 = vpop.permute.xlu0 %131
  %135 = vset.pattern.permute.xlu0 0
  %136 = vperm.xlu0 %135, %v128
  %v137 = vpop.permute.xlu0 %136
  %vm139 = vcmask 64512
  %v141 = vsel %vm139, %v125, 0
  %v144 = vsel %vm139, %v126, 0
  %146 = vmatprep.subr.mxu0 0.0
  %147 = vmatpush1.msra.mxu0 0.0
  %148 = vmatprep.subr.mxu0 0.0
  %149 = vmatpush1.msra.mxu0 0.0
  %150 = vmatprep.subr.mxu0 0.0
  %151 = vmatpush1.msra.mxu0 0.0
  %152 = vmatprep.subr.mxu0 0.0
  %153 = vmatpush1.msra.mxu0 0.0
  %154 = vmatprep.subr.mxu0 0.0
  %155 = vmatpush1.msra.mxu0 0.0
  %156 = vmatprep.subr.mxu0 0.0
  %157 = vmatpush1.msra.mxu0 0.0
  %158 = vmatprep.subr.mxu0 0.0
  %159 = vmatpush1.msra.mxu0 0.0
  %160 = vmatprep.subr.mxu0 0.0
  %161 = vmatpush1.msra.mxu0 0.0
  %162 = vmatprep.subr.mxu0 0.0
  %163 = vmatpush1.msra.mxu0 0.0
  %164 = vmatprep.subr.mxu0 0.0
  %165 = vmatpush1.msra.mxu0 0.0
  %166 = vmatprep.subr.mxu0 0.0
  %167 = vmatpush1.msra.mxu0 0.0
  %168 = vmatprep.subr.mxu0 0.0
  %169 = vmatpush1.msra.mxu0 0.0
  %170 = vmatprep.subr.mxu0 0.0
  %171 = vmatpush1.msra.mxu0 0.0
  %172 = vmatprep.subr.mxu0 0.0
  %173 = vmatpush1.msra.mxu0 0.0
  %174 = vmatprep.subr.mxu0 0.0
  %175 = vmatpush1.msra.mxu0 0.0
  %176 = vmatprep.subr.mxu0 0.0
  %177 = vmatpush1.msra.mxu0 %v124
  %178 = vmatprep.subr.mxu0 0.0
  %179 = vmatpush2.msra.mxu0 0.0
  %180 = vmatprep.subr.mxu0 0.0
  %181 = vmatpush2.msra.mxu0 0.0
  %182 = vmatprep.subr.mxu0 0.0
  %183 = vmatpush2.msra.mxu0 0.0
  %184 = vmatprep.subr.mxu0 0.0
  %185 = vmatpush2.msra.mxu0 0.0
  %186 = vmatprep.subr.mxu0 0.0
  %187 = vmatpush2.msra.mxu0 0.0
  %188 = vmatprep.subr.mxu0 0.0
  %189 = vmatpush2.msra.mxu0 0.0
  %190 = vmatprep.subr.mxu0 0.0
  %191 = vmatpush2.msra.mxu0 0.0
  %192 = vmatprep.subr.mxu0 0.0
  %193 = vmatpush2.msra.mxu0 0.0
  %194 = vmatprep.subr.mxu0 0.0
  %195 = vmatpush2.msra.mxu0 0.0
  %196 = vmatprep.subr.mxu0 0.0
  %197 = vmatpush2.msra.mxu0 0.0
  %198 = vmatprep.subr.mxu0 0.0
  %199 = vmatpush2.msra.mxu0 0.0
  %200 = vmatprep.subr.mxu0 0.0
  %201 = vmatpush2.msra.mxu0 0.0
  %202 = vmatprep.subr.mxu0 0.0
  %203 = vmatpush2.msra.mxu0 0.0
  %204 = vmatprep.subr.mxu0 0.0
  %205 = vmatpush2.msra.mxu0 0.0
  %206 = vmatprep.subr.mxu0 0.0
  %207 = vmatpush2.msra.mxu0 0.0
  %208 = vmatprep.subr.mxu0 0.0
  %209 = vmatpush2.msra.mxu0 0.0
  %210 = vmatprep.mubr.f32.mxu0 0.0
  %211 = vmatmul.mubr.f32.gmra.mxu0 %v141
  %v212 = vpop.f32.mrf.mxu0
  %v213 = vadd.f32 %v132, %v212
  %v214 = vpop.f32.mrf.mxu0
  %215 = vmatprep.mubr.f32.mxu0 0.0
  %216 = vmatmul.mubr.f32.gmra.mxu0 %v144
  %v217 = vpop.f32.mrf.mxu0
  %v218 = vadd.f32 %v137, %v217
  %v219 = vpop.f32.mrf.mxu0
  %220 = vdwg.mxu0
  %vm221 = vcmp.gt.f32.partialorder %v213, 0.0
  %vm222 = vcmp.gt.f32.partialorder %v218, 0.0
  %v223 = vmul.f32 %v213, 1.442695
  %v224 = vpow.pop %v223
  %v225 = vmul.f32 %v218, 1.442695
  %v226 = vpow.pop %v225
  %v227 = vsub.f32 %v224, 1.0
  %v228 = vsub.f32 %v226, 1.0
  %v229 = vmul.f32 %v227, 1.6732632
  %v230 = vmul.f32 %v228, 1.6732632
  %v231 = vsel %vm221, %v213, %v229
  %v232 = vsel %vm222, %v218, %v230
  %v233 = vmul.f32 %v231, 1.050701
  %v234 = vmul.f32 %v232, 1.050701
  %v235 = vld [vmem:[%s5] sm:$0xff]
  %v236 = vld [vmem:[%s6] sm:$0xff]
  %238 = vset.pattern.permute.xlu0 0
  %239 = vperm.xlu0 %238, %v236
  %v240 = vpop.permute.xlu0 %239
  %vm242 = vcmask 130048
  %v244 = vsel %vm242, %v235, 0
  %246 = vmatprep.subr.mxu0 0.0
  %247 = vmatpush1.msra.mxu0 0.0
  %248 = vmatprep.subr.mxu0 0.0
  %249 = vmatpush1.msra.mxu0 0.0
  %250 = vmatprep.subr.mxu0 0.0
  %251 = vmatpush1.msra.mxu0 0.0
  %252 = vmatprep.subr.mxu0 0.0
  %253 = vmatpush1.msra.mxu0 0.0
  %254 = vmatprep.subr.mxu0 0.0
  %255 = vmatpush1.msra.mxu0 0.0
  %256 = vmatprep.subr.mxu0 0.0
  %257 = vmatpush1.msra.mxu0 0.0
  %258 = vmatprep.subr.mxu0 0.0
  %259 = vmatpush1.msra.mxu0 0.0
  %260 = vmatprep.subr.mxu0 0.0
  %261 = vmatpush1.msra.mxu0 0.0
  %262 = vmatprep.subr.mxu0 0.0
  %263 = vmatpush1.msra.mxu0 0.0
  %264 = vmatprep.subr.mxu0 0.0
  %265 = vmatpush1.msra.mxu0 0.0
  %266 = vmatprep.subr.mxu0 0.0
  %267 = vmatpush1.msra.mxu0 0.0
  %268 = vmatprep.subr.mxu0 0.0
  %269 = vmatpush1.msra.mxu0 0.0
  %270 = vmatprep.subr.mxu0 0.0
  %271 = vmatpush1.msra.mxu0 0.0
  %272 = vmatprep.subr.mxu0 0.0
  %273 = vmatpush1.msra.mxu0 0.0
  %274 = vmatprep.subr.mxu0 0.0
  %275 = vmatpush1.msra.mxu0 %v234
  %276 = vmatprep.subr.mxu0 0.0
  %277 = vmatpush1.msra.mxu0 %v233
  %278 = vmatprep.subr.mxu0 0.0
  %279 = vmatpush2.msra.mxu0 0.0
  %280 = vmatprep.subr.mxu0 0.0
  %281 = vmatpush2.msra.mxu0 0.0
  %282 = vmatprep.subr.mxu0 0.0
  %283 = vmatpush2.msra.mxu0 0.0
  %284 = vmatprep.subr.mxu0 0.0
  %285 = vmatpush2.msra.mxu0 0.0
  %286 = vmatprep.subr.mxu0 0.0
  %287 = vmatpush2.msra.mxu0 0.0
  %288 = vmatprep.subr.mxu0 0.0
  %289 = vmatpush2.msra.mxu0 0.0
  %290 = vmatprep.subr.mxu0 0.0
  %291 = vmatpush2.msra.mxu0 0.0
  %292 = vmatprep.subr.mxu0 0.0
  %293 = vmatpush2.msra.mxu0 0.0
  %294 = vmatprep.subr.mxu0 0.0
  %295 = vmatpush2.msra.mxu0 0.0
  %296 = vmatprep.subr.mxu0 0.0
  %297 = vmatpush2.msra.mxu0 0.0
  %298 = vmatprep.subr.mxu0 0.0
  %299 = vmatpush2.msra.mxu0 0.0
  %300 = vmatprep.subr.mxu0 0.0
  %301 = vmatpush2.msra.mxu0 0.0
  %302 = vmatprep.subr.mxu0 0.0
  %303 = vmatpush2.msra.mxu0 0.0
  %304 = vmatprep.subr.mxu0 0.0
  %305 = vmatpush2.msra.mxu0 0.0
  %306 = vmatprep.subr.mxu0 0.0
  %307 = vmatpush2.msra.mxu0 0.0
  %308 = vmatprep.subr.mxu0 0.0
  %309 = vmatpush2.msra.mxu0 0.0
  %310 = vmatprep.mubr.f32.mxu0 0.0
  %311 = vmatmul.mubr.f32.gmra.mxu0 %v244
  %v312 = vpop.f32.mrf.mxu0
  %v313 = vadd.f32 %v240, %v312
  %v314 = vpop.f32.mrf.mxu0
  %315 = vdwg.mxu0
  %vm316 = vcmp.gt.f32.partialorder %v313, 0.0
  %v317 = vmul.f32 %v313, 1.442695
  %v318 = vpow.pop %v317
  %v319 = vsub.f32 %v318, 1.0
  %v320 = vmul.f32 %v319, 1.6732632
  %v321 = vsel %vm316, %v313, %v320
  %v322 = vmul.f32 %v321, 1.050701
  %v323 = vld [vmem:[%s7] sm:$0xff]
  %v324 = vld [vmem:[%s8] sm:$0xff]
  %326 = vset.pattern.permute.xlu0 0
  %327 = vperm.xlu0 %326, %v324
  %v328 = vpop.permute.xlu0 %327
  %v331 = vsel %vm139, %v323, 0
  %333 = vmatprep.subr.mxu0 0.0
  %334 = vmatpush1.msra.mxu0 0.0
  %335 = vmatprep.subr.mxu0 0.0
  %336 = vmatpush1.msra.mxu0 0.0
  %337 = vmatprep.subr.mxu0 0.0
  %338 = vmatpush1.msra.mxu0 0.0
  %339 = vmatprep.subr.mxu0 0.0
  %340 = vmatpush1.msra.mxu0 0.0
  %341 = vmatprep.subr.mxu0 0.0
  %342 = vmatpush1.msra.mxu0 0.0
  %343 = vmatprep.subr.mxu0 0.0
  %344 = vmatpush1.msra.mxu0 0.0
  %345 = vmatprep.subr.mxu0 0.0
  %346 = vmatpush1.msra.mxu0 0.0
  %347 = vmatprep.subr.mxu0 0.0
  %348 = vmatpush1.msra.mxu0 0.0
  %349 = vmatprep.subr.mxu0 0.0
  %350 = vmatpush1.msra.mxu0 0.0
  %351 = vmatprep.subr.mxu0 0.0
  %352 = vmatpush1.msra.mxu0 0.0
  %353 = vmatprep.subr.mxu0 0.0
  %354 = vmatpush1.msra.mxu0 0.0
  %355 = vmatprep.subr.mxu0 0.0
  %356 = vmatpush1.msra.mxu0 0.0
  %357 = vmatprep.subr.mxu0 0.0
  %358 = vmatpush1.msra.mxu0 0.0
  %359 = vmatprep.subr.mxu0 0.0
  %360 = vmatpush1.msra.mxu0 0.0
  %361 = vmatprep.subr.mxu0 0.0
  %362 = vmatpush1.msra.mxu0 0.0
  %363 = vmatprep.subr.mxu0 0.0
  %364 = vmatpush1.msra.mxu0 %v322
  %365 = vmatprep.subr.mxu0 0.0
  %366 = vmatpush2.msra.mxu0 0.0
  %367 = vmatprep.subr.mxu0 0.0
  %368 = vmatpush2.msra.mxu0 0.0
  %369 = vmatprep.subr.mxu0 0.0
  %370 = vmatpush2.msra.mxu0 0.0
  %371 = vmatprep.subr.mxu0 0.0
  %372 = vmatpush2.msra.mxu0 0.0
  %373 = vmatprep.subr.mxu0 0.0
  %374 = vmatpush2.msra.mxu0 0.0
  %375 = vmatprep.subr.mxu0 0.0
  %376 = vmatpush2.msra.mxu0 0.0
  %377 = vmatprep.subr.mxu0 0.0
  %378 = vmatpush2.msra.mxu0 0.0
  %379 = vmatprep.subr.mxu0 0.0
  %380 = vmatpush2.msra.mxu0 0.0
  %381 = vmatprep.subr.mxu0 0.0
  %382 = vmatpush2.msra.mxu0 0.0
  %383 = vmatprep.subr.mxu0 0.0
  %384 = vmatpush2.msra.mxu0 0.0
  %385 = vmatprep.subr.mxu0 0.0
  %386 = vmatpush2.msra.mxu0 0.0
  %387 = vmatprep.subr.mxu0 0.0
  %388 = vmatpush2.msra.mxu0 0.0
  %389 = vmatprep.subr.mxu0 0.0
  %390 = vmatpush2.msra.mxu0 0.0
  %391 = vmatprep.subr.mxu0 0.0
  %392 = vmatpush2.msra.mxu0 0.0
  %393 = vmatprep.subr.mxu0 0.0
  %394 = vmatpush2.msra.mxu0 0.0
  %395 = vmatprep.subr.mxu0 0.0
  %396 = vmatpush2.msra.mxu0 0.0
  %397 = vmatprep.mubr.f32.mxu0 0.0
  %398 = vmatmul.mubr.f32.gmra.mxu0 %v331
  %v399 = vpop.f32.mrf.mxu0
  %v400 = vadd.f32 %v328, %v399
  %v401 = vpop.f32.mrf.mxu0
  %402 = vdwg.mxu0
  %403 = vst [vmem:[%s9] sm:$0x1] %v400
  // Predicated region
  $region38: #{_net_forward_impl.1} parent=0 // pred_check
    _
  $region39: #{_net_forward_impl.1} parent=0 // pred_check_branch
    %405 = sbr.rel (0) target = $region41
  $region40: #{_net_forward_impl.1} parent=0 // pred_region
    _
  $region41: #{_net_forward_impl.1} parent=0 // pred_fallthru
    _
  // Predicated region
  $region42: #{_net_forward_impl.1} parent=0 // pred_check
    _
  $region43: #{_net_forward_impl.1} parent=0 // pred_check_branch
    %407 = sbr.rel (0) target = $region45
  $region44: #{_net_forward_impl.1} parent=0 // pred_region
    _
  $region45: #{_net_forward_impl.1} parent=0 // pred_fallthru
    _

</llo_original>
